<compile_context>
chip_gen: v7x
topology: tpu7x:2x2x1
jax: 0.10.0
libtpu: 0.0.40
codegen_flags: <defaults>
</compile_context>

<pallas_src>
import jax
import jax.numpy as jnp
from jax.experimental import pallas as pl
from jax.experimental.pallas import tpu as pltpu

LANES = 128
SUBLANES = 8
_MIN_GRID_STEPS = 4     # keep both v7x TensorCores and the DMA pipeline busy


def _quant_kernel(x_ref, o_ref):
    # clamp and *255 in the input dtype (matches torch); bf16/f16 -> f32 is
    # exact, so a float32 floor reproduces the uint8 truncation exactly.
    x = jnp.clip(x_ref[...], 0.0, 1.0)
    x = x * 255.0                                   # stays in input dtype
    q = jnp.floor(x.astype(jnp.float32))            # trunc == floor (x >= 0)
    o_ref[...] = q * jnp.float32(1.0 / 255.0)       # float32 output


def _vmem_capacity_bytes():
    try:
        info = pltpu.get_tpu_info()
        cap = getattr(info, "vmem_capacity_bytes", None)
        if cap:
            return int(cap)
    except Exception:
        pass
    return 64 << 20     # conservative default: v7x has 64 MiB per TensorCore


def _default_block_rows(in_itemsize, vmem_cap):
    # Target HBM bytes streamed per grid step (input read + f32 output write).
    # 16 MiB/step -> ~5.2 us/step on v7x (overhead ~7%) and fits 64 MiB VMEM
    # double-buffered; on 128 MiB chips (v5e/v6e) go a bit larger.
    step_bytes = (24 << 20) if vmem_cap >= (96 << 20) else (16 << 20)
    row_bytes = LANES * (in_itemsize + 4)
    br = step_bytes // row_bytes
    return max(SUBLANES, (br // SUBLANES) * SUBLANES)


def _round_up(v, m):
    return ((v + m - 1) // m) * m


def quantization_forward(x, *, block_rows=None, donate=False):
    """Applies the Quantization module forward pass; returns float32."""
    orig_shape = x.shape
    n = x.size
    if n == 0:
        return jnp.zeros(orig_shape, jnp.float32)

    in_itemsize = jnp.dtype(x.dtype).itemsize
    vmem_cap = _vmem_capacity_bytes()

    flat = jnp.ravel(x)        # metadata-only for contiguous inputs

    # Lane alignment: when n % 128 == 0 this is a pure-metadata reshape path
    # (no pad, no post-slice).  A ragged last *block* along rows is handled by
    # the grid itself (pl.cdiv + masked boundary writeback).
    rem = n % LANES
    aligned = rem == 0
    if not aligned:
        # TODO(synk): a fully zero-copy lane-ragged tail would need a manual
        # pl.ANY / DMA path; for this elementwise op we accept one pad copy +
        # one slice copy on the (rare) lane-unaligned path only.
        flat = jnp.pad(flat, (0, LANES - rem))
    rows = flat.size // LANES
    x2d = flat.reshape(rows, LANES)

    if block_rows is None:
        block_rows = _default_block_rows(in_itemsize, vmem_cap)
    # Guarantee >= _MIN_GRID_STEPS grid steps when possible so the parallel
    # axis can be split across v7x's two TensorCores and the in-DMA -> out-DMA
    # pipeline has work to overlap.
    if rows >= _MIN_GRID_STEPS * SUBLANES:
        cap = max(SUBLANES, ((rows // _MIN_GRID_STEPS) // SUBLANES) * SUBLANES)
        block_rows = min(block_rows, cap)
    block_rows = max(SUBLANES, min(block_rows, _round_up(rows, SUBLANES)))
    block_rows = (block_rows // SUBLANES) * SUBLANES

    grid = (pl.cdiv(rows, block_rows),)     # ragged last block is masked

    in_block_bytes = block_rows * LANES * in_itemsize
    out_block_bytes = block_rows * LANES * 4
    vmem_limit = 2 * (in_block_bytes + out_block_bytes) + (2 << 20)
    vmem_limit = int(min(max(vmem_limit, 16 << 20), (vmem_cap * 3) // 4))

    # Reuse a donated float32 input buffer for the output (no extra HBM alloc).
    io_aliases = {0: 0} if (donate and aligned and x.dtype == jnp.float32) else {}

    out2d = pl.pallas_call(
        _quant_kernel,
        out_shape=jax.ShapeDtypeStruct((rows, LANES), jnp.float32),
        grid_spec=pltpu.PrefetchScalarGridSpec(
            num_scalar_prefetch=0,
            grid=grid,
            in_specs=[pl.BlockSpec((block_rows, LANES), lambda i: (i, 0))],
            out_specs=pl.BlockSpec((block_rows, LANES), lambda i: (i, 0)),
        ),
        compiler_params=pltpu.CompilerParams(
            dimension_semantics=("parallel",),
            vmem_limit_bytes=vmem_limit,
        ),
        input_output_aliases=io_aliases,
    )(x2d)

    if aligned:
        return out2d.reshape(orig_shape)
    return out2d.reshape(-1)[:n].reshape(orig_shape)


def _reference(x):
    # Same op order as PyTorch: clamp and *255 in the input dtype, truncate,
    # rescale in float32.
    x = jnp.clip(x, 0.0, 1.0)
    x = (x * 255.0).astype(jnp.float32)
    return jnp.floor(x) / 255.0


if __name__ == "__main__":
    key = jax.random.PRNGKey(0)

    # Image-like NCHW input: (B=2, C=4, 16, 16) float32 (lane-aligned path).
    x = jax.random.uniform(key, (2, 4, 16, 16), dtype=jnp.float32,
                           minval=-0.25, maxval=1.25)
    y = jax.block_until_ready(quantization_forward(x))
    y_ref = _reference(x)
    assert y.shape == x.shape and y.dtype == jnp.float32
    assert jnp.max(jnp.abs(y - y_ref)) < 1e-6

    # Lane-unaligned bf16 input exercises the pad/slice fallback path and the
    # input-dtype clamp/scale ordering.
    x2 = jax.random.uniform(jax.random.PRNGKey(1), (3, 5, 7),
                            dtype=jnp.bfloat16, minval=-0.5, maxval=1.5)
    y2 = jax.block_until_ready(quantization_forward(x2))
    y2_ref = _reference(x2)
    assert y2.shape == x2.shape and y2.dtype == jnp.float32
    assert jnp.max(jnp.abs(y2 - y2_ref)) < 1e-6

    # Aligned f32 input through the input_output_aliases (donate) code path.
    x3 = jax.random.uniform(jax.random.PRNGKey(2), (4, 8, 128),
                            dtype=jnp.float32, minval=-0.1, maxval=1.1)
    y3_ref = _reference(x3)
    y3 = jax.block_until_ready(quantization_forward(x3, donate=True))
    assert y3.shape == x3.shape and y3.dtype == jnp.float32
    assert jnp.max(jnp.abs(y3 - y3_ref)) < 1e-6

    # TODO(synk): backward (straight-through identity gradient) not implemented;
    # forward-only per the task spec.
    print("KERNEL_OK")
</pallas_src>

<mosaic_0001>
module attributes {stable_mosaic.version = 11 : i64} {
  func.func @_quant_kernel(%arg0: i32, %arg1: memref<16x128xf32, #tpu.memory_space<vmem>>, %arg2: memref<16x128xf32, #tpu.memory_space<vmem>>) attributes {dimension_semantics = [#tpu.dimension_semantics<parallel>], iteration_bounds = array<i64: 1>, scalar_prefetch = 0 : i64, scratch_operands = 0 : i64, tpu.core_type = #tpu.core_type<tc>, window_params = [{transform_indices = @transform_0, window_bounds = array<i64: 16, 128>}, {transform_indices = @transform_1, window_bounds = array<i64: 16, 128>}]} {
    %c0 = arith.constant 0 : index
    %c0_0 = arith.constant 0 : index
    %0 = vector.load %arg1[%c0, %c0_0] : memref<16x128xf32, #tpu.memory_space<vmem>>, vector<16x128xf32>
    %cst = arith.constant 0.000000e+00 : f32
    %cst_1 = arith.constant 1.000000e+00 : f32
    %1 = vector.broadcast %cst : f32 to vector<16x128xf32>
    %2 = arith.maximumf %1, %0 : vector<16x128xf32>
    %3 = vector.broadcast %cst_1 : f32 to vector<16x128xf32>
    %4 = arith.minimumf %3, %2 : vector<16x128xf32>
    %cst_2 = arith.constant 2.550000e+02 : f32
    %5 = vector.broadcast %cst_2 : f32 to vector<16x128xf32>
    %6 = arith.mulf %4, %5 : vector<16x128xf32>
    %7 = math.floor %6 : vector<16x128xf32>
    %cst_3 = arith.constant 0.00392156886 : f32
    %8 = vector.broadcast %cst_3 : f32 to vector<16x128xf32>
    %9 = arith.mulf %7, %8 : vector<16x128xf32>
    %c0_4 = arith.constant 0 : index
    %c0_5 = arith.constant 0 : index
    %10 = vector.load %arg2[%c0_4, %c0_5] : memref<16x128xf32, #tpu.memory_space<vmem>>, vector<16x128xf32>
    tpu.vector_store %arg2[%c0_4, %c0_5], %9 {strides = array<i32>} : memref<16x128xf32, #tpu.memory_space<vmem>>, vector<16x128xf32>,
    return
  }
  func.func @transform_0(%arg0: i32) -> (i32, i32) {
    %c0_i32 = arith.constant 0 : i32
    %c0_i32_0 = arith.constant 0 : i32
    return %arg0, %c0_i32 : i32, i32
  }
  func.func @transform_1(%arg0: i32) -> (i32, i32) {
    %c0_i32 = arith.constant 0 : i32
    %c0_i32_0 = arith.constant 0 : i32
    return %arg0, %c0_i32 : i32, i32
  }
}

</mosaic_0001>

<llo_original>
// kernel: tpu_custom_call.1
$region0: #{tpu_custom_call.1}
  #allocation0 [shape = 'u32[]', space=smem, size = 0x4, offset = 0x4, fixed_abs, tag = 'smem constant byte address 0x4 - core index']
  #allocation1 [shape = 'u32[144,128]{1,0:T(1,128)}', space=vmem, size = 0x12000, scoped, tag = 'internal scratch']
  %s0 = inlined_call_operand.hbm [shape: f32[16,128], index: 0, kind: input, shape index: {}]
  %s1 = inlined_call_operand.hbm [shape: f32[16,128], index: 1, kind: output, shape index: {}]
  %s2 = sld [smem:[#allocation0]]
  $region18: #{tpu_custom_call.1} parent=0
    _
  %s4 = ssub.s32 1, %s2
  %s5 = scalar_select 0, %s4, %s2
  $region1: #{tpu_custom_call.1} parent=0
    #allocation2 [shape = 'u8[8192]{0}', space=vmem, size = 0x2000, scoped, tag = 'input window, operand 0, single buffered']
    #allocation3 [shape = 's32[1]{0}', space=sflag, size = 0x4, scoped, tag = 'scoped memory for tpu_custom_call.1']
    #allocation4 [shape = 's32[1]{0}', space=sflag, size = 0x4, scoped, tag = 'scoped memory for tpu_custom_call.1']
    #allocation5 [shape = 'u8[8192]{0}', space=vmem, size = 0x2000, scoped, tag = 'output window, operand 0, single buffered']
    %6 = vsyncpa [#allocation3], 0
    %7 = vsyncpa [#allocation4], 0
    // Predicated region
    $region2: #{tpu_custom_call.1} parent=1 // pred_check
      _
    $region3: #{tpu_custom_call.1} parent=1 // pred_check_branch
      %9 = sbr.rel (0) target = $region5
    $region4: #{tpu_custom_call.1} parent=1 // pred_region
      %s11 = ssub.s32 256, 256
      %12 = vsyncadd [#allocation3], %s11
      %s13 = sshll.u32 [#allocation2], 4
      %s14 = int_to_ptr.vmem [resolvable:$true] %s13
      %19 = dma.hbm_to_vmem [thread:$0]  %s0, 256, %s14, [#allocation3], 128, 128, 8
    $region5: #{tpu_custom_call.1} parent=1 // pred_fallthru
      _
    // Predicated region
    $region6: #{tpu_custom_call.1} parent=1 // pred_check
      _
    $region7: #{tpu_custom_call.1} parent=1 // pred_check_branch
      %21 = sbr.rel (0) target = $region9
    $region8: #{tpu_custom_call.1} parent=1 // pred_region
      %22 = dma.done [#allocation3], 256
    $region9: #{tpu_custom_call.1} parent=1 // pred_fallthru
      _
    %v23 = vld [vmem:[#allocation2] sm:$0xff]
    %v24 = vld [vmem:[#allocation2 + $0x8] sm:$0xff]
    %v25 = vmax.f32 %v23, 0.0
    %v26 = vmax.f32 %v24, 0.0
    %v27 = vmin.f32 %v25, 1.0
    %v28 = vmin.f32 %v26, 1.0
    %v29 = vmul.f32 %v27, 255.0
    %v30 = vmul.f32 %v28, 255.0
    %v31 = vfloor.f32 %v29
    %v32 = vfloor.f32 %v30
    %v33 = vmul.f32 %v31, 0.003921569
    %v34 = vmul.f32 %v32, 0.003921569
    %35 = vst [vmem:[#allocation5] sm:$0xff] %v33
    %36 = vst [vmem:[#allocation5 + $0x8] sm:$0xff] %v34
    // Predicated region
    $region10: #{tpu_custom_call.1} parent=1 // pred_check
      _
    $region11: #{tpu_custom_call.1} parent=1 // pred_check_branch
      %38 = sbr.rel (0) target = $region13
    $region12: #{tpu_custom_call.1} parent=1 // pred_region
      %s40 = ssub.s32 256, 256
      %41 = vsyncadd [#allocation4], %s40
      %s42 = sshll.u32 [#allocation5], 4
      %s43 = int_to_ptr.vmem [resolvable:$true] %s42
      %48 = dma.vmem_to_hbm [thread:$0]  %s43, 256, %s1, [#allocation4], 128, 128, 8
    $region13: #{tpu_custom_call.1} parent=1 // pred_fallthru
      _
    // Predicated region
    $region14: #{tpu_custom_call.1} parent=1 // pred_check
      _
    $region15: #{tpu_custom_call.1} parent=1 // pred_check_branch
      %50 = sbr.rel (0) target = $region17
    $region16: #{tpu_custom_call.1} parent=1 // pred_region
      %51 = dma.done [#allocation4], 256
    $region17: #{tpu_custom_call.1} parent=1 // pred_fallthru
      _
    %52 = vsyncpa [#allocation3], 1
    %53 = vsyncpa [#allocation4], 1

</llo_original>
